<compile_context>
chip_gen: v7x
topology: tpu7x:2x2x1
jax: 0.10.0
libtpu: 0.0.40
codegen_flags: <defaults>
</compile_context>

<pallas_src>
import functools

import jax
import jax.numpy as jnp
from jax.experimental import pallas as pl
from jax.experimental.pallas import tpu as pltpu


LANES = 128            # slab lane width: minimum lane-dense unit
MAX_TILE_ROWS = 8192   # 8192 * 128 * 4 B = 4 MiB f32 tile (v7x-safe)


def _linreg_kernel(params_ref, x_ref, o_ref):
    # params_ref: (4,) float32 in SMEM -> [w1, b1, w2, b2]
    w1 = params_ref[0]
    b1 = params_ref[1]
    w2 = params_ref[2]
    b2 = params_ref[3]
    # Fuse the two affine layers on the scalar unit (2 scalar ops total),
    # leaving one multiply-add per element on the VPU, in float32.
    wc = w1 * w2
    bc = b1 * w2 + b2
    x = x_ref[...].astype(jnp.float32)
    o_ref[...] = (x * wc + bc).astype(o_ref.dtype)


def _round_up(v, m):
    return ((v + m - 1) // m) * m


def _choose_tiling(total):
    """Trace-time tiling decision. Returns (tm, padded_rows)."""
    rows = pl.cdiv(total, LANES)
    rows8 = _round_up(rows, 8)                      # sublane alignment
    if rows8 >= 16:
        # v7x megacore: guarantee >= 2 grid steps when there is enough work.
        cap = min(MAX_TILE_ROWS, _round_up((rows8 + 1) // 2, 8))
    else:
        cap = rows8
    # Largest power-of-two tile (>= 8 rows) whose tail padding stays small.
    waste_limit = max(8, rows8 // 16)               # <= ~6% junk traffic
    cand = 8
    while cand * 2 <= cap:
        cand *= 2
    tm = 8
    while cand >= 8:
        if (-rows8) % cand <= waste_limit:
            tm = cand
            break
        cand //= 2
    padded_rows = _round_up(rows8, tm)
    return tm, padded_rows


def _forward(x, w1, b1, w2, b2):
    n, f = x.shape
    assert f == 1, "LinearRegression expects feature dim == 1"
    total = n * f
    dtype = x.dtype
    itemsize = jnp.dtype(dtype).itemsize

    # Keep parameters in float32 regardless of activation dtype (correctness
    # note from review): only the final result is cast to x.dtype.
    params = jnp.concatenate(
        [w1.reshape(-1), b1.reshape(-1), w2.reshape(-1), b2.reshape(-1)]
    ).astype(jnp.float32)

    tm, padded_rows = _choose_tiling(total)
    padded_total = padded_rows * LANES

    # Lane-dense slab. Pad is skipped entirely when the shape already tiles
    # exactly; otherwise allow_input_fusion lets XLA fuse it into the DMA.
    x_flat = x.reshape(-1)
    if padded_total != total:
        x_flat = jnp.pad(x_flat, (0, padded_total - total))
    x_slab = x_flat.reshape(padded_rows, LANES)

    grid = (padded_rows // tm,)

    out_slab = pl.pallas_call(
        _linreg_kernel,
        out_shape=jax.ShapeDtypeStruct((padded_rows, LANES), dtype),
        grid=grid,
        in_specs=[
            pl.BlockSpec(memory_space=pltpu.MemorySpace.SMEM),  # packed params
            pl.BlockSpec((tm, LANES), lambda i: (i, 0)),        # x slab tile
        ],
        out_specs=pl.BlockSpec((tm, LANES), lambda i: (i, 0)),
        compiler_params=pltpu.CompilerParams(
            dimension_semantics=("parallel",),
            allow_input_fusion=[False, True],
            vmem_limit_bytes=32 << 20,
        ),
        cost_estimate=pl.CostEstimate(
            flops=2 * padded_total,
            transcendentals=0,
            bytes_accessed=2 * padded_total * itemsize,
        ),
    )(params, x_slab)

    if padded_total == total:
        # Pure reshape (bitcast): no extra HBM pass.
        return out_slab.reshape(n, f)
    # Ragged tail: single cheap slice pass (padding is bounded small).
    return out_slab.reshape(-1)[:total].reshape(n, f)


# Jit the whole wrapper so the tiny pre/post reshapes are fused/elided by XLA.
linear_regression_forward = jax.jit(_forward)


if __name__ == "__main__":
    key = jax.random.PRNGKey(0)
    kx, kw1, kb1, kw2, kb2 = jax.random.split(key, 5)

    # nn.Linear(1, 1): weight [1, 1], bias [1]; mimic PyTorch U(-1, 1) init.
    w1 = jax.random.uniform(kw1, (1, 1), jnp.float32, -1.0, 1.0)
    b1 = jax.random.uniform(kb1, (1,), jnp.float32, -1.0, 1.0)
    w2 = jax.random.uniform(kw2, (1, 1), jnp.float32, -1.0, 1.0)
    b2 = jax.random.uniform(kb2, (1,), jnp.float32, -1.0, 1.0)

    def ref_forward(x):
        return (x * w1[0, 0] + b1[0]) * w2[0, 0] + b2[0]

    ok = True
    # N=8: single tiny tile; N=2048: exact tiling (no pad, no slice) with a
    # 2-step grid; N=3000: ragged tail exercising pad + 2-step grid path.
    for N in (8, 2048, 3000):
        x = jax.random.normal(kx, (N, 1), dtype=jnp.float32)
        out = jax.block_until_ready(linear_regression_forward(x, w1, b1, w2, b2))
        ref = ref_forward(x)
        ok = ok and (out.shape == (N, 1))
        ok = ok and bool(jnp.allclose(out, ref, atol=1e-5, rtol=1e-5))

    assert ok
    print("KERNEL_OK")
</pallas_src>

<mosaic_0001>
module attributes {stable_mosaic.version = 11 : i64} {
  func.func @_linreg_kernel(%arg0: i32, %arg1: memref<4xf32, #tpu.memory_space<smem>>, %arg2: memref<8x128xf32, #tpu.memory_space<vmem>>, %arg3: memref<8x128xf32, #tpu.memory_space<vmem>>) attributes {dimension_semantics = [#tpu.dimension_semantics<parallel>], iteration_bounds = array<i64: 1>, scalar_prefetch = 0 : i64, scratch_operands = 0 : i64, tpu.core_type = #tpu.core_type<tc>, window_params = [{transform_indices = @transform_0, window_bounds = array<i64: 4>}, {transform_indices = @transform_1, window_bounds = array<i64: 8, 128>}, {transform_indices = @transform_2, window_bounds = array<i64: 8, 128>}]} {
    %c0 = arith.constant 0 : index
    %0 = memref.load %arg1[%c0] : memref<4xf32, #tpu.memory_space<smem>>
    %c1 = arith.constant 1 : index
    %1 = memref.load %arg1[%c1] : memref<4xf32, #tpu.memory_space<smem>>
    %c2 = arith.constant 2 : index
    %2 = memref.load %arg1[%c2] : memref<4xf32, #tpu.memory_space<smem>>
    %c3 = arith.constant 3 : index
    %3 = memref.load %arg1[%c3] : memref<4xf32, #tpu.memory_space<smem>>
    %4 = arith.mulf %0, %2 : f32
    %5 = arith.mulf %1, %2 : f32
    %6 = arith.addf %5, %3 : f32
    %c0_0 = arith.constant 0 : index
    %c0_1 = arith.constant 0 : index
    %7 = vector.load %arg2[%c0_0, %c0_1] : memref<8x128xf32, #tpu.memory_space<vmem>>, vector<8x128xf32>
    %8 = vector.broadcast %4 : f32 to vector<8x128xf32>
    %9 = arith.mulf %7, %8 : vector<8x128xf32>
    %10 = vector.broadcast %6 : f32 to vector<8x128xf32>
    %11 = arith.addf %9, %10 : vector<8x128xf32>
    %c0_2 = arith.constant 0 : index
    %c0_3 = arith.constant 0 : index
    %12 = vector.load %arg3[%c0_2, %c0_3] : memref<8x128xf32, #tpu.memory_space<vmem>>, vector<8x128xf32>
    tpu.vector_store %arg3[%c0_2, %c0_3], %11 {strides = array<i32>} : memref<8x128xf32, #tpu.memory_space<vmem>>, vector<8x128xf32>,
    return
  }
  func.func @transform_0(%arg0: i32) -> i32 {
    %c0_i32 = arith.constant 0 : i32
    %c0_i32_0 = arith.constant 0 : i32
    return %c0_i32 : i32
  }
  func.func @transform_1(%arg0: i32) -> (i32, i32) {
    %c0_i32 = arith.constant 0 : i32
    %c0_i32_0 = arith.constant 0 : i32
    return %arg0, %c0_i32 : i32, i32
  }
  func.func @transform_2(%arg0: i32) -> (i32, i32) {
    %c0_i32 = arith.constant 0 : i32
    %c0_i32_0 = arith.constant 0 : i32
    return %arg0, %c0_i32 : i32, i32
  }
}

</mosaic_0001>

<llo_original>
// kernel: _forward.2
$region0: #{_forward.2}
  #allocation0 [shape = 'u32[]', space=smem, size = 0x4, offset = 0x4, fixed_abs, tag = 'smem constant byte address 0x4 - core index']
  #allocation1 [shape = 'u32[144,128]{1,0:T(1,128)}', space=vmem, size = 0x12000, scoped, tag = 'internal scratch']
  #allocation2 [shape = 'u32[2048]{0}', space=vmem, size = 0x2000, scoped, tag = 'scoped memory for _forward.2']
  #allocation3 [shape = 'u32[2048]{0}', space=vmem, size = 0x2000, scoped, tag = 'scoped memory for _forward.2']
  #allocation4 [shape = 'u32[2048]{0}', space=vmem, size = 0x2000, scoped, tag = 'scoped memory for _forward.2']
  #allocation5 [shape = 'u32[2048]{0}', space=vmem, size = 0x2000, scoped, tag = 'scoped memory for _forward.2']
  #allocation6 [shape = 'u32[2048]{0}', space=vmem, size = 0x2000, scoped, tag = 'scoped memory for _forward.2']
  %s0 = inlined_call_operand.vmem [shape: f32[4], index: 0, kind: input, shape index: {}]
  %s1 = inlined_call_operand.vmem [shape: f32[8], index: 1, kind: input, shape index: {}]
  %s2 = inlined_call_operand.<no memory space> [shape: f32[], index: 2, kind: input, shape index: {}]
  %s3 = inlined_call_operand.vmem [shape: f32[8,128], index: 3, kind: output, shape index: {}]
  %s4 = sld [smem:[#allocation0]]
  $region22: #{_forward.2} parent=0
    _
  %s6 = ssub.s32 1, %s4
  %s7 = scalar_select 0, %s6, %s4
  %v8 = vstv %s2
  $region1: #{_forward.2} parent=0
    #allocation7 [shape = 'u8[512]{0}', space=smem, size = 0x200, scoped, tag = 'input window, operand 0, single buffered']
    #allocation8 [shape = 's32[1]{0}', space=sflag, size = 0x4, scoped, tag = 'scoped memory for _forward.2']
    #allocation9 [shape = 'u8[4096]{0}', space=vmem, size = 0x1000, dematerialized = true, scoped, tag = 'FusionAdapter Buffer %fusion.1 = f32[8,128]{1,0:T(8,128)} fusion(%param_1.2, %param_2), kind=kLoop, calls=%fused_computation.1.clone, metadata={op_name="jit(_forward)/reshape" stack_frame_id=12}']
    %9 = vsyncpa [#allocation8], 0
    // Predicated region
    $region2: #{_forward.2} parent=1 // pred_check
      _
    $region3: #{_forward.2} parent=1 // pred_check_branch
      %11 = sbr.rel (0) target = $region5
    $region4: #{_forward.2} parent=1 // pred_region
      %s13 = ssub.s32 16, 16
      %14 = vsyncadd [#allocation8], %s13
      %s16 = sshll.u32 %s0, 4
      %s17 = int_to_ptr.vmem [resolvable:$true] %s16
      %19 = dma.vmem_to_smem %s17, 16, [#allocation7], [#allocation8]
    $region5: #{_forward.2} parent=1 // pred_fallthru
      _
    // Predicated region
    $region6: #{_forward.2} parent=1 // pred_check
      _
    $region7: #{_forward.2} parent=1 // pred_check_branch
      %21 = sbr.rel (0) target = $region9
    $region8: #{_forward.2} parent=1 // pred_region
      _
    $region9: #{_forward.2} parent=1 // pred_fallthru
      _
    // Predicated region
    $region10: #{_forward.2} parent=1 // pred_check
      _
    $region11: #{_forward.2} parent=1 // pred_check_branch
      %23 = sbr.rel (0) target = $region13
    $region12: #{_forward.2} parent=1 // pred_region
      %24 = dma.done [#allocation8], 16
    $region13: #{_forward.2} parent=1 // pred_fallthru
      _
    %25 = sfence
    %v26 = vld [vmem:[%s1] sm:$0x1]
    %v27 = vlaneseq
    %vm29 = vcmp.lt.s32.totalorder %v27, 8
    %v30 = vsel %vm29, %v26, %v8
    %32 = vst [vmem:[#allocation9] sm:$0xff] %v30
    %s33 = sld [smem:[#allocation7]]
    %s34 = sld [smem:[#allocation7 + $0x1]]
    %s35 = sld [smem:[#allocation7 + $0x2]]
    %s36 = sld [smem:[#allocation7 + $0x3]]
    %s37 = smul.f32 %s33, %s35
    %s38 = smul.f32 %s34, %s35
    %s39 = sadd.f32 %s38, %s36
    %v40 = vld [vmem:[#allocation9] sm:$0xff]
    %v41 = vstv %s37
    %v42 = vmul.f32 %v40, %v41
    %v43 = vstv %s39
    %v44 = vadd.f32 %v42, %v43
    %45 = vst [vmem:[%s3] sm:$0xff] %v44
    // Predicated region
    $region14: #{_forward.2} parent=1 // pred_check
      _
    $region15: #{_forward.2} parent=1 // pred_check_branch
      %47 = sbr.rel (0) target = $region17
    $region16: #{_forward.2} parent=1 // pred_region
      _
    $region17: #{_forward.2} parent=1 // pred_fallthru
      _
    // Predicated region
    $region18: #{_forward.2} parent=1 // pred_check
      _
    $region19: #{_forward.2} parent=1 // pred_check_branch
      %49 = sbr.rel (0) target = $region21
    $region20: #{_forward.2} parent=1 // pred_region
      _
    $region21: #{_forward.2} parent=1 // pred_fallthru
      _
    %50 = vsyncpa [#allocation8], 1

</llo_original>
